<compile_context>
chip_gen: v5e
topology: v5e:2x2
jax: 0.10.0
libtpu: 0.0.40
codegen_flags: <defaults>
</compile_context>

<pallas_src>
import functools
import math

import jax
import jax.numpy as jnp
from jax.experimental import pallas as pl
from jax.experimental.pallas import tpu as pltpu


# ----------------------------- Pallas kernel ------------------------------- #
def _rnn_fused_kernel(g0_ref, w_ih_ref, w_hh_ref, b_ref, h0_ref,
                      out_ref, hidden_ref, h_carry, act_buf,
                      *, num_layers, chunk, batch, group, nonlinearity):
    """Fused multi-layer RNN over one time chunk.

    g0_ref:     (chunk*B, H)   layer-0 pre-activations (x@Wih0 + b0), time-major rows
                               [t*B + b], f32.
    w_ih_ref:   (L-1, H, H)    input->hidden weights for layers 1..L-1 (bf16).
    w_hh_ref:   (L,   H, H)    hidden->hidden weights (bf16).
    b_ref:      (L-1, 1, H)    combined biases (b_ih+b_hh) for layers 1..L-1 (f32).
    h0_ref:     (L, B, H)      initial hidden state.
    out_ref:    (B, chunk, H)  last-layer activations, batch-first block of (B, T, H).
    hidden_ref: (L, B, H)      final per-layer hidden state (resident output).
    h_carry:    VMEM (L, B, H) f32, hidden states carried across chunks.
    act_buf:    VMEM (chunk*B, H) bf16, inter-layer activation slab (time-major).
    """
    c = pl.program_id(0)

    @pl.when(c == 0)
    def _():
        h_carry[...] = h0_ref[...].astype(jnp.float32)

    if nonlinearity == "tanh":
        act = jnp.tanh                       # EUP
    else:                                    # "relu"
        act = lambda v: jnp.maximum(v, 0.0)  # VPU

    for l in range(num_layers):              # static, small layer count
        last = (l == num_layers - 1)

        if l > 0:
            # Hoisted input projection for layer l over the whole chunk:
            # one (chunk*B, H) x (H, H) bf16 matmul (f32 accumulation) instead of
            # `chunk` tiny per-step dots.  act_buf holds layer l-1 activations (bf16).
            g_all = jnp.dot(act_buf[...], w_ih_ref[l - 1],
                            preferred_element_type=jnp.float32) + b_ref[l - 1]

        w_hh_l = w_hh_ref[l]                 # (H, H) bf16, loaded once per layer
        h = h_carry[l]                       # (B, H) f32 carry

        # Sequential recurrence, statically unrolled in groups of `group` timesteps so
        # that stores are sublane/lane-dense instead of per-step masked RMWs.
        for i0 in range(0, chunk, group):
            if l == 0:
                # Direct, aligned load of the layer-0 pre-activation group (no full
                # g0 -> act_buf copy).
                g_blk = g0_ref[pl.ds(i0 * batch, group * batch), :]
            else:
                g_blk = g_all[i0 * batch:(i0 + group) * batch, :]

            hs = []
            for j in range(group):
                pre = g_blk[j * batch:(j + 1) * batch, :] + jnp.dot(
                    h.astype(w_hh_l.dtype), w_hh_l,
                    preferred_element_type=jnp.float32)
                h = act(pre)
                hs.append(h)

            if last:
                # Batch-first output written directly from the kernel (no wrapper-side
                # HBM transpose): one dense (group, H) store per batch element.
                for b in range(batch):
                    blk = jnp.concatenate([hj[b:b + 1, :] for hj in hs], axis=0)
                    out_ref[b, pl.ds(i0, group), :] = blk.astype(out_ref.dtype)
            else:
                # One aligned (group*B, H) store of this group's activations.
                act_buf[pl.ds(i0 * batch, group * batch), :] = (
                    jnp.concatenate(hs, axis=0).astype(act_buf.dtype))

        h_carry[l] = h

    # Tiny; written every chunk so the resident output block is always valid.
    hidden_ref[...] = h_carry[...].astype(hidden_ref.dtype)


def _pick_time_chunk(T, cap=32):
    """Largest chunk <= cap with T % chunk == 0 and chunk % 8 == 0 (keeps the
    (B, chunk, H) output block and (chunk*B, H) g0 block sublane-legal while bounding
    the unroll).  Falls back to the full sequence (full-extent blocks are legal)."""
    top = min(T, cap)
    top -= top % 8
    for tt in range(top, 0, -8):
        if T % tt == 0:
            return tt
    return T


def _pick_group(chunk):
    """Timesteps batched per store: largest divisor of chunk that is <= 8."""
    for g in range(min(chunk, 8), 0, -1):
        if chunk % g == 0:
            return g
    return 1


def rnn_forward_pallas(x, params, h0, nonlinearity, *, chunk_cap=32,
                       matmul_dtype=jnp.bfloat16):
    """x: (B, T, D) batch_first. Returns (out (B,T,H), hidden (L,B,H))."""
    B, T, D = x.shape
    L = len(params)
    H = params[0]["w_hh"].shape[0]

    # 1) Hoist the layer-0 input projection out of the recurrence: one large
    #    (B*T, D) x (D, H) XLA matmul, emitted time-major and flattened to a
    #    sublane-dense (T*B, H) slab (f32: it is the additive accumulate term).
    g0 = jnp.einsum("btd,dh->tbh", x, params[0]["w_ih"]) + params[0]["b"]
    g0 = g0.reshape(T * B, H).astype(jnp.float32)

    # 2) Stack per-layer weights.  MXU operands are bf16 (f32 accumulation in-kernel).
    #    The dead layer-0 slot of W_ih / bias is dropped (kernel indexes with l-1).
    w_hh_all = jnp.stack([p["w_hh"] for p in params]).astype(matmul_dtype)       # (L,H,H)
    if L > 1:
        w_ih_rest = jnp.stack([p["w_ih"] for p in params[1:]]).astype(matmul_dtype)
        b_rest = jnp.stack([p["b"] for p in params[1:]]).astype(jnp.float32)     # (L-1,1,H)
    else:
        w_ih_rest = jnp.zeros((1, H, H), matmul_dtype)   # dummy, never indexed
        b_rest = jnp.zeros((1, 1, H), jnp.float32)
    Lr = w_ih_rest.shape[0]

    chunk = _pick_time_chunk(T, chunk_cap)
    group = _pick_group(chunk)
    n_chunks = T // chunk

    kernel = functools.partial(_rnn_fused_kernel, num_layers=L, chunk=chunk,
                               batch=B, group=group, nonlinearity=nonlinearity)

    out, hidden = pl.pallas_call(
        kernel,
        out_shape=(jax.ShapeDtypeStruct((B, T, H), x.dtype),
                   jax.ShapeDtypeStruct((L, B, H), x.dtype)),
        grid_spec=pltpu.PrefetchScalarGridSpec(
            num_scalar_prefetch=0,
            grid=(n_chunks,),
            in_specs=[
                pl.BlockSpec((chunk * B, H), lambda c: (c, 0)),   # g0 time chunk
                pl.BlockSpec((Lr, H, H), lambda c: (0, 0, 0)),    # W_ih (layers>=1)
                pl.BlockSpec((L, H, H), lambda c: (0, 0, 0)),     # W_hh
                pl.BlockSpec((Lr, 1, H), lambda c: (0, 0, 0)),    # biases (layers>=1)
                pl.BlockSpec((L, B, H), lambda c: (0, 0, 0)),     # h0
            ],
            out_specs=(
                pl.BlockSpec((B, chunk, H), lambda c: (0, c, 0)), # batch-first out chunk
                pl.BlockSpec((L, B, H), lambda c: (0, 0, 0)),     # final hidden (resident)
            ),
            scratch_shapes=[
                pltpu.VMEM((L, B, H), jnp.float32),               # hidden carry (f32)
                pltpu.VMEM((chunk * B, H), matmul_dtype),         # inter-layer activations
            ],
        ),
        compiler_params=pltpu.CompilerParams(
            # Time recurrence is inherently sequential.
            dimension_semantics=("arbitrary",),
            # Plenty for these shapes; can be raised (v5e/v6e have 128 MiB VMEM) for
            # larger time chunks on long sequences.
            vmem_limit_bytes=32 * 1024 * 1024,
        ),
    )(g0, w_ih_rest, w_hh_all, b_rest, h0)

    return out, hidden


# ------------------------- Module (params + forward) ------------------------ #
def calculate_gain(nonlinearity):
    if nonlinearity == "tanh":
        return 5.0 / 3.0
    if nonlinearity == "relu":
        return math.sqrt(2.0)
    raise ValueError(nonlinearity)


def init_rnn_params(key, num_inputs, hidden_dim, num_layers, dtype=jnp.float32):
    """Deterministic init matching nn.RNN's default U(-1/sqrt(H), 1/sqrt(H))."""
    params = []
    bound = 1.0 / math.sqrt(hidden_dim)
    for layer in range(num_layers):
        d_in = num_inputs if layer == 0 else hidden_dim
        key, k1, k2, k3, k4 = jax.random.split(key, 5)
        w_ih = jax.random.uniform(k1, (d_in, hidden_dim), dtype, -bound, bound)
        w_hh = jax.random.uniform(k2, (hidden_dim, hidden_dim), dtype, -bound, bound)
        b_ih = jax.random.uniform(k3, (1, hidden_dim), dtype, -bound, bound)
        b_hh = jax.random.uniform(k4, (1, hidden_dim), dtype, -bound, bound)
        params.append({"w_ih": w_ih, "w_hh": w_hh, "b": b_ih + b_hh})
    return params


def xavier_hidden0(key, num_layers, batch, hidden_dim, nonlinearity, init, dtype=jnp.float32):
    """Replicates torch.nn.init.xavier_{normal,uniform}_ on a (L, B, H) tensor."""
    gain = calculate_gain(nonlinearity)
    # torch fan computation for a 3-D tensor (L, B, H): fan_in = B*H, fan_out = L*H
    fan_in = batch * hidden_dim
    fan_out = num_layers * hidden_dim
    if init == "xavierNorm":
        std = gain * math.sqrt(2.0 / (fan_in + fan_out))
        return std * jax.random.normal(key, (num_layers, batch, hidden_dim), dtype)
    elif init == "xavierUniform":
        a = gain * math.sqrt(6.0 / (fan_in + fan_out))
        return jax.random.uniform(key, (num_layers, batch, hidden_dim), dtype, -a, a)
    else:
        raise ValueError("Acceptable Options include: xavierNorm, xavierUniform")


def eeg_rnn_building_block_forward(x, params, h0_key, *,
                                   nonlinearity="tanh", initialization="xavierNorm",
                                   matmul_dtype=jnp.bfloat16):
    """x: (B, T, num_inputs) batch_first.  Returns (out (B,T,H), hidden (L,B,H))."""
    B = x.shape[0]
    num_layers = len(params)
    hidden_dim = params[0]["w_hh"].shape[0]
    h0 = xavier_hidden0(h0_key, num_layers, B, hidden_dim, nonlinearity,
                        initialization, dtype=x.dtype)
    return rnn_forward_pallas(x, params, h0, nonlinearity, matmul_dtype=matmul_dtype)


# ------------------------------ Reference ----------------------------------- #
def _reference_rnn(x, params, h0, nonlinearity, matmul_dtype=jnp.bfloat16):
    """Pure-JAX reference (lax.scan).  With matmul_dtype=bfloat16 it applies the same
    operand rounding as the kernel (f32 accumulation / f32 hidden carry); with float32
    it is the exact original-module numerics."""
    act = jnp.tanh if nonlinearity == "tanh" else (lambda v: jnp.maximum(v, 0.0))
    x_tm = jnp.transpose(x, (1, 0, 2))
    h_lasts = []
    for layer, p in enumerate(params):
        w_ih = p["w_ih"] if layer == 0 else p["w_ih"].astype(matmul_dtype)
        w_hh = p["w_hh"].astype(matmul_dtype)
        b = p["b"]
        cast_in = layer > 0

        def step(h, xt, w_ih=w_ih, w_hh=w_hh, b=b, cast_in=cast_in):
            xin = xt.astype(matmul_dtype) if cast_in else xt
            g = jnp.dot(xin, w_ih, preferred_element_type=jnp.float32) + b
            pre = g + jnp.dot(h.astype(matmul_dtype), w_hh,
                              preferred_element_type=jnp.float32)
            h_new = act(pre)
            return h_new, h_new

        h_final, outs = jax.lax.scan(step, h0[layer], x_tm)
        x_tm = outs
        h_lasts.append(h_final)
    return jnp.transpose(x_tm, (1, 0, 2)), jnp.stack(h_lasts, axis=0)


# --------------------------------- Main -------------------------------------- #
if __name__ == "__main__":
    # Small shapes implied by the forward: x is (batch, seq, num_inputs) (batch_first RNN).
    batch, seq, num_inputs, hidden_dim, num_layers = 2, 8, 16, 32, 2
    nonlinearity = "tanh"
    initialization = "xavierNorm"

    key = jax.random.PRNGKey(0)
    k_x, k_p, k_h0 = jax.random.split(key, 3)

    x = jax.random.normal(k_x, (batch, seq, num_inputs), jnp.float32)
    params = init_rnn_params(k_p, num_inputs, hidden_dim, num_layers)

    out, hidden = eeg_rnn_building_block_forward(
        x, params, k_h0, nonlinearity=nonlinearity, initialization=initialization)
    out = jax.block_until_ready(out)
    hidden = jax.block_until_ready(hidden)

    assert out.shape == (batch, seq, hidden_dim)
    assert hidden.shape == (num_layers, batch, hidden_dim)

    # Validate against a pure-JAX reference using the SAME h0 and the same bf16-operand
    # numerics (the review's bf16-MXU optimization loosens bitwise f32 equality).
    h0 = xavier_hidden0(k_h0, num_layers, batch, hidden_dim, nonlinearity,
                        initialization, dtype=x.dtype)
    out_ref, hid_ref = _reference_rnn(x, params, h0, nonlinearity,
                                      matmul_dtype=jnp.bfloat16)
    assert jnp.allclose(out, out_ref, atol=2e-2, rtol=2e-2)
    assert jnp.allclose(hidden, hid_ref, atol=2e-2, rtol=2e-2)

    # Loose sanity check against the original full-f32 numerics (bf16 operand rounding
    # compounds slightly over the recurrence).
    out_f32, hid_f32 = _reference_rnn(x, params, h0, nonlinearity,
                                      matmul_dtype=jnp.float32)
    assert jnp.allclose(out, out_f32, atol=1.5e-1, rtol=1.5e-1)
    assert jnp.allclose(hidden, hid_f32, atol=1.5e-1, rtol=1.5e-1)

    print("KERNEL_OK")
</pallas_src>

<mosaic_0001>
module attributes {stable_mosaic.version = 11 : i64} {
  func.func @_rnn_fused_kernel(%arg0: i32, %arg1: memref<16x32xf32, #tpu.memory_space<vmem>>, %arg2: memref<1x32x32xbf16, #tpu.memory_space<vmem>>, %arg3: memref<2x32x32xbf16, #tpu.memory_space<vmem>>, %arg4: memref<1x1x32xf32, #tpu.memory_space<vmem>>, %arg5: memref<2x2x32xf32, #tpu.memory_space<vmem>>, %arg6: memref<2x8x32xf32, #tpu.memory_space<vmem>>, %arg7: memref<2x2x32xf32, #tpu.memory_space<vmem>>, %arg8: memref<2x2x32xf32, #tpu.memory_space<vmem>>, %arg9: memref<16x32xbf16, #tpu.memory_space<vmem>>) attributes {dimension_semantics = [#tpu.dimension_semantics<arbitrary>], iteration_bounds = array<i64: 1>, scalar_prefetch = 0 : i64, scratch_operands = 2 : i64, tpu.core_type = #tpu.core_type<tc>, window_params = [{transform_indices = @transform_0, window_bounds = array<i64: 16, 32>}, {pipeline_mode = #tpu.pipeline_mode<synchronous>, transform_indices = @transform_1, window_bounds = array<i64: 1, 32, 32>}, {pipeline_mode = #tpu.pipeline_mode<synchronous>, transform_indices = @transform_2, window_bounds = array<i64: 2, 32, 32>}, {pipeline_mode = #tpu.pipeline_mode<synchronous>, transform_indices = @transform_3, window_bounds = array<i64: 1, 1, 32>}, {pipeline_mode = #tpu.pipeline_mode<synchronous>, transform_indices = @transform_4, window_bounds = array<i64: 2, 2, 32>}, {transform_indices = @transform_5, window_bounds = array<i64: 2, 8, 32>}, {pipeline_mode = #tpu.pipeline_mode<synchronous>, transform_indices = @transform_6, window_bounds = array<i64: 2, 2, 32>}]} {
    %c0_i32 = arith.constant 0 : i32
    %0 = arith.cmpi eq, %arg0, %c0_i32 : i32
    %1 = arith.extui %0 : i1 to i32
    %c0_i32_0 = arith.constant 0 : i32
    %2 = arith.cmpi ne, %1, %c0_i32_0 : i32
    scf.if %2 {
      %c0_57 = arith.constant 0 : index
      %c0_58 = arith.constant 0 : index
      %c0_59 = arith.constant 0 : index
      %135 = vector.load %arg5[%c0_57, %c0_58, %c0_59] : memref<2x2x32xf32, #tpu.memory_space<vmem>>, vector<2x2x32xf32>
      %c0_60 = arith.constant 0 : index
      %c0_61 = arith.constant 0 : index
      %c0_62 = arith.constant 0 : index
      %136 = vector.load %arg8[%c0_60, %c0_61, %c0_62] : memref<2x2x32xf32, #tpu.memory_space<vmem>>, vector<2x2x32xf32>
      tpu.vector_store %arg8[%c0_60, %c0_61, %c0_62], %135 {strides = array<i32>} : memref<2x2x32xf32, #tpu.memory_space<vmem>>, vector<2x2x32xf32>,
    } else {
    }
    %c0 = arith.constant 0 : index
    %c0_1 = arith.constant 0 : index
    %c0_2 = arith.constant 0 : index
    %3 = vector.load %arg3[%c0, %c0_1, %c0_2] : memref<2x32x32xbf16, #tpu.memory_space<vmem>>, vector<1x32x32xbf16>
    %4 = vector.shape_cast %3 : vector<1x32x32xbf16> to vector<32x32xbf16>
    %c0_3 = arith.constant 0 : index
    %c0_4 = arith.constant 0 : index
    %c0_5 = arith.constant 0 : index
    %5 = vector.load %arg8[%c0_3, %c0_4, %c0_5] : memref<2x2x32xf32, #tpu.memory_space<vmem>>, vector<1x2x32xf32>
    %6 = vector.shape_cast %5 : vector<1x2x32xf32> to vector<2x32xf32>
    %c0_6 = arith.constant 0 : index
    %c0_7 = arith.constant 0 : index
    %7 = vector.load %arg1[%c0_6, %c0_7] : memref<16x32xf32, #tpu.memory_space<vmem>>, vector<16x32xf32>
    %8 = vector.extract_strided_slice %7 {offsets = [0, 0], sizes = [2, 32], strides = [1, 1]} : vector<16x32xf32> to vector<2x32xf32>
    %9 = arith.truncf %6 : vector<2x32xf32> to vector<2x32xbf16>
    %cst = arith.constant dense<0.000000e+00> : vector<2x32xf32>
    %10 = tpu.matmul %9, %4, %cst {dimension_numbers = #tpu.dot_dimension_numbers<[1], [0], [0], [1], [0, 0, 1, 1], [], []>} : vector<2x32xbf16>, vector<32x32xbf16>, vector<2x32xf32> -> vector<2x32xf32>
    %11 = arith.addf %8, %10 : vector<2x32xf32>
    %12 = math.tanh %11 : vector<2x32xf32>
    %13 = vector.extract_strided_slice %7 {offsets = [2, 0], sizes = [2, 32], strides = [1, 1]} : vector<16x32xf32> to vector<2x32xf32>
    %14 = arith.truncf %12 : vector<2x32xf32> to vector<2x32xbf16>
    %cst_8 = arith.constant dense<0.000000e+00> : vector<2x32xf32>
    %15 = tpu.matmul %14, %4, %cst_8 {dimension_numbers = #tpu.dot_dimension_numbers<[1], [0], [0], [1], [0, 0, 1, 1], [], []>} : vector<2x32xbf16>, vector<32x32xbf16>, vector<2x32xf32> -> vector<2x32xf32>
    %16 = arith.addf %13, %15 : vector<2x32xf32>
    %17 = math.tanh %16 : vector<2x32xf32>
    %18 = vector.extract_strided_slice %7 {offsets = [4, 0], sizes = [2, 32], strides = [1, 1]} : vector<16x32xf32> to vector<2x32xf32>
    %19 = arith.truncf %17 : vector<2x32xf32> to vector<2x32xbf16>
    %cst_9 = arith.constant dense<0.000000e+00> : vector<2x32xf32>
    %20 = tpu.matmul %19, %4, %cst_9 {dimension_numbers = #tpu.dot_dimension_numbers<[1], [0], [0], [1], [0, 0, 1, 1], [], []>} : vector<2x32xbf16>, vector<32x32xbf16>, vector<2x32xf32> -> vector<2x32xf32>
    %21 = arith.addf %18, %20 : vector<2x32xf32>
    %22 = math.tanh %21 : vector<2x32xf32>
    %23 = vector.extract_strided_slice %7 {offsets = [6, 0], sizes = [2, 32], strides = [1, 1]} : vector<16x32xf32> to vector<2x32xf32>
    %24 = arith.truncf %22 : vector<2x32xf32> to vector<2x32xbf16>
    %cst_10 = arith.constant dense<0.000000e+00> : vector<2x32xf32>
    %25 = tpu.matmul %24, %4, %cst_10 {dimension_numbers = #tpu.dot_dimension_numbers<[1], [0], [0], [1], [0, 0, 1, 1], [], []>} : vector<2x32xbf16>, vector<32x32xbf16>, vector<2x32xf32> -> vector<2x32xf32>
    %26 = arith.addf %23, %25 : vector<2x32xf32>
    %27 = math.tanh %26 : vector<2x32xf32>
    %28 = vector.extract_strided_slice %7 {offsets = [8, 0], sizes = [2, 32], strides = [1, 1]} : vector<16x32xf32> to vector<2x32xf32>
    %29 = arith.truncf %27 : vector<2x32xf32> to vector<2x32xbf16>
    %cst_11 = arith.constant dense<0.000000e+00> : vector<2x32xf32>
    %30 = tpu.matmul %29, %4, %cst_11 {dimension_numbers = #tpu.dot_dimension_numbers<[1], [0], [0], [1], [0, 0, 1, 1], [], []>} : vector<2x32xbf16>, vector<32x32xbf16>, vector<2x32xf32> -> vector<2x32xf32>
    %31 = arith.addf %28, %30 : vector<2x32xf32>
    %32 = math.tanh %31 : vector<2x32xf32>
    %33 = vector.extract_strided_slice %7 {offsets = [10, 0], sizes = [2, 32], strides = [1, 1]} : vector<16x32xf32> to vector<2x32xf32>
    %34 = arith.truncf %32 : vector<2x32xf32> to vector<2x32xbf16>
    %cst_12 = arith.constant dense<0.000000e+00> : vector<2x32xf32>
    %35 = tpu.matmul %34, %4, %cst_12 {dimension_numbers = #tpu.dot_dimension_numbers<[1], [0], [0], [1], [0, 0, 1, 1], [], []>} : vector<2x32xbf16>, vector<32x32xbf16>, vector<2x32xf32> -> vector<2x32xf32>
    %36 = arith.addf %33, %35 : vector<2x32xf32>
    %37 = math.tanh %36 : vector<2x32xf32>
    %38 = vector.extract_strided_slice %7 {offsets = [12, 0], sizes = [2, 32], strides = [1, 1]} : vector<16x32xf32> to vector<2x32xf32>
    %39 = arith.truncf %37 : vector<2x32xf32> to vector<2x32xbf16>
    %cst_13 = arith.constant dense<0.000000e+00> : vector<2x32xf32>
    %40 = tpu.matmul %39, %4, %cst_13 {dimension_numbers = #tpu.dot_dimension_numbers<[1], [0], [0], [1], [0, 0, 1, 1], [], []>} : vector<2x32xbf16>, vector<32x32xbf16>, vector<2x32xf32> -> vector<2x32xf32>
    %41 = arith.addf %38, %40 : vector<2x32xf32>
    %42 = math.tanh %41 : vector<2x32xf32>
    %43 = vector.extract_strided_slice %7 {offsets = [14, 0], sizes = [2, 32], strides = [1, 1]} : vector<16x32xf32> to vector<2x32xf32>
    %44 = arith.truncf %42 : vector<2x32xf32> to vector<2x32xbf16>
    %cst_14 = arith.constant dense<0.000000e+00> : vector<2x32xf32>
    %45 = tpu.matmul %44, %4, %cst_14 {dimension_numbers = #tpu.dot_dimension_numbers<[1], [0], [0], [1], [0, 0, 1, 1], [], []>} : vector<2x32xbf16>, vector<32x32xbf16>, vector<2x32xf32> -> vector<2x32xf32>
    %46 = arith.addf %43, %45 : vector<2x32xf32>
    %47 = math.tanh %46 : vector<2x32xf32>
    %48 = tpu.concatenate %12, %17, %22, %27, %32, %37, %42, %47 in 0 : vector<2x32xf32>, vector<2x32xf32>, vector<2x32xf32>, vector<2x32xf32>, vector<2x32xf32>, vector<2x32xf32>, vector<2x32xf32>, vector<2x32xf32> -> vector<16x32xf32>
    %49 = arith.truncf %48 : vector<16x32xf32> to vector<16x32xbf16>
    %c0_15 = arith.constant 0 : index
    %c0_16 = arith.constant 0 : index
    %50 = vector.load %arg9[%c0_15, %c0_16] : memref<16x32xbf16, #tpu.memory_space<vmem>>, vector<16x32xbf16>
    tpu.vector_store %arg9[%c0_15, %c0_16], %49 {strides = array<i32>} : memref<16x32xbf16, #tpu.memory_space<vmem>>, vector<16x32xbf16>,
    %c0_17 = arith.constant 0 : index
    %c0_18 = arith.constant 0 : index
    %c0_19 = arith.constant 0 : index
    %51 = vector.load %arg8[%c0_17, %c0_18, %c0_19] : memref<2x2x32xf32, #tpu.memory_space<vmem>>, vector<1x2x32xf32>
    %52 = vector.shape_cast %51 : vector<1x2x32xf32> to vector<2x32xf32>
    %53 = vector.shape_cast %47 : vector<2x32xf32> to vector<1x2x32xf32>
    tpu.vector_store %arg8[%c0_17, %c0_18, %c0_19], %53 {strides = array<i32>} : memref<2x2x32xf32, #tpu.memory_space<vmem>>, vector<1x2x32xf32>,
    %c0_20 = arith.constant 0 : index
    %c0_21 = arith.constant 0 : index
    %54 = vector.load %arg9[%c0_20, %c0_21] : memref<16x32xbf16, #tpu.memory_space<vmem>>, vector<16x32xbf16>
    %c0_22 = arith.constant 0 : index
    %c0_23 = arith.constant 0 : index
    %c0_24 = arith.constant 0 : index
    %55 = vector.load %arg2[%c0_22, %c0_23, %c0_24] : memref<1x32x32xbf16, #tpu.memory_space<vmem>>, vector<1x32x32xbf16>
    %56 = vector.shape_cast %55 : vector<1x32x32xbf16> to vector<32x32xbf16>
    %cst_25 = arith.constant dense<0.000000e+00> : vector<16x32xf32>
    %57 = tpu.matmul %54, %56, %cst_25 {dimension_numbers = #tpu.dot_dimension_numbers<[1], [0], [0], [1], [0, 0, 1, 1], [], []>} : vector<16x32xbf16>, vector<32x32xbf16>, vector<16x32xf32> -> vector<16x32xf32>
    %c0_26 = arith.constant 0 : index
    %c0_27 = arith.constant 0 : index
    %c0_28 = arith.constant 0 : index
    %58 = vector.load %arg4[%c0_26, %c0_27, %c0_28] : memref<1x1x32xf32, #tpu.memory_space<vmem>>, vector<1x1x32xf32>
    %59 = vector.shape_cast %58 : vector<1x1x32xf32> to vector<1x32xf32>
    %60 = vector.broadcast %59 : vector<1x32xf32> to vector<16x32xf32>
    %61 = arith.addf %57, %60 : vector<16x32xf32>
    %c1 = arith.constant 1 : index
    %c0_29 = arith.constant 0 : index
    %c0_30 = arith.constant 0 : index
    %62 = vector.load %arg3[%c1, %c0_29, %c0_30] : memref<2x32x32xbf16, #tpu.memory_space<vmem>>, vector<1x32x32xbf16>
    %63 = vector.shape_cast %62 : vector<1x32x32xbf16> to vector<32x32xbf16>
    %c1_31 = arith.constant 1 : index
    %c0_32 = arith.constant 0 : index
    %c0_33 = arith.constant 0 : index
    %64 = vector.load %arg8[%c1_31, %c0_32, %c0_33] : memref<2x2x32xf32, #tpu.memory_space<vmem>>, vector<1x2x32xf32>
    %65 = vector.shape_cast %64 : vector<1x2x32xf32> to vector<2x32xf32>
    %66 = vector.extract_strided_slice %61 {offsets = [0, 0], sizes = [2, 32], strides = [1, 1]} : vector<16x32xf32> to vector<2x32xf32>
    %67 = arith.truncf %65 : vector<2x32xf32> to vector<2x32xbf16>
    %cst_34 = arith.constant dense<0.000000e+00> : vector<2x32xf32>
    %68 = tpu.matmul %67, %63, %cst_34 {dimension_numbers = #tpu.dot_dimension_numbers<[1], [0], [0], [1], [0, 0, 1, 1], [], []>} : vector<2x32xbf16>, vector<32x32xbf16>, vector<2x32xf32> -> vector<2x32xf32>
    %69 = arith.addf %66, %68 : vector<2x32xf32>
    %70 = math.tanh %69 : vector<2x32xf32>
    %71 = vector.extract_strided_slice %61 {offsets = [2, 0], sizes = [2, 32], strides = [1, 1]} : vector<16x32xf32> to vector<2x32xf32>
    %72 = arith.truncf %70 : vector<2x32xf32> to vector<2x32xbf16>
    %cst_35 = arith.constant dense<0.000000e+00> : vector<2x32xf32>
    %73 = tpu.matmul %72, %63, %cst_35 {dimension_numbers = #tpu.dot_dimension_numbers<[1], [0], [0], [1], [0, 0, 1, 1], [], []>} : vector<2x32xbf16>, vector<32x32xbf16>, vector<2x32xf32> -> vector<2x32xf32>
    %74 = arith.addf %71, %73 : vector<2x32xf32>
    %75 = math.tanh %74 : vector<2x32xf32>
    %76 = vector.extract_strided_slice %61 {offsets = [4, 0], sizes = [2, 32], strides = [1, 1]} : vector<16x32xf32> to vector<2x32xf32>
    %77 = arith.truncf %75 : vector<2x32xf32> to vector<2x32xbf16>
    %cst_36 = arith.constant dense<0.000000e+00> : vector<2x32xf32>
    %78 = tpu.matmul %77, %63, %cst_36 {dimension_numbers = #tpu.dot_dimension_numbers<[1], [0], [0], [1], [0, 0, 1, 1], [], []>} : vector<2x32xbf16>, vector<32x32xbf16>, vector<2x32xf32> -> vector<2x32xf32>
    %79 = arith.addf %76, %78 : vector<2x32xf32>
    %80 = math.tanh %79 : vector<2x32xf32>
    %81 = vector.extract_strided_slice %61 {offsets = [6, 0], sizes = [2, 32], strides = [1, 1]} : vector<16x32xf32> to vector<2x32xf32>
    %82 = arith.truncf %80 : vector<2x32xf32> to vector<2x32xbf16>
    %cst_37 = arith.constant dense<0.000000e+00> : vector<2x32xf32>
    %83 = tpu.matmul %82, %63, %cst_37 {dimension_numbers = #tpu.dot_dimension_numbers<[1], [0], [0], [1], [0, 0, 1, 1], [], []>} : vector<2x32xbf16>, vector<32x32xbf16>, vector<2x32xf32> -> vector<2x32xf32>
    %84 = arith.addf %81, %83 : vector<2x32xf32>
    %85 = math.tanh %84 : vector<2x32xf32>
    %86 = vector.extract_strided_slice %61 {offsets = [8, 0], sizes = [2, 32], strides = [1, 1]} : vector<16x32xf32> to vector<2x32xf32>
    %87 = arith.truncf %85 : vector<2x32xf32> to vector<2x32xbf16>
    %cst_38 = arith.constant dense<0.000000e+00> : vector<2x32xf32>
    %88 = tpu.matmul %87, %63, %cst_38 {dimension_numbers = #tpu.dot_dimension_numbers<[1], [0], [0], [1], [0, 0, 1, 1], [], []>} : vector<2x32xbf16>, vector<32x32xbf16>, vector<2x32xf32> -> vector<2x32xf32>
    %89 = arith.addf %86, %88 : vector<2x32xf32>
    %90 = math.tanh %89 : vector<2x32xf32>
    %91 = vector.extract_strided_slice %61 {offsets = [10, 0], sizes = [2, 32], strides = [1, 1]} : vector<16x32xf32> to vector<2x32xf32>
    %92 = arith.truncf %90 : vector<2x32xf32> to vector<2x32xbf16>
    %cst_39 = arith.constant dense<0.000000e+00> : vector<2x32xf32>
    %93 = tpu.matmul %92, %63, %cst_39 {dimension_numbers = #tpu.dot_dimension_numbers<[1], [0], [0], [1], [0, 0, 1, 1], [], []>} : vector<2x32xbf16>, vector<32x32xbf16>, vector<2x32xf32> -> vector<2x32xf32>
    %94 = arith.addf %91, %93 : vector<2x32xf32>
    %95 = math.tanh %94 : vector<2x32xf32>
    %96 = vector.extract_strided_slice %61 {offsets = [12, 0], sizes = [2, 32], strides = [1, 1]} : vector<16x32xf32> to vector<2x32xf32>
    %97 = arith.truncf %95 : vector<2x32xf32> to vector<2x32xbf16>
    %cst_40 = arith.constant dense<0.000000e+00> : vector<2x32xf32>
    %98 = tpu.matmul %97, %63, %cst_40 {dimension_numbers = #tpu.dot_dimension_numbers<[1], [0], [0], [1], [0, 0, 1, 1], [], []>} : vector<2x32xbf16>, vector<32x32xbf16>, vector<2x32xf32> -> vector<2x32xf32>
    %99 = arith.addf %96, %98 : vector<2x32xf32>
    %100 = math.tanh %99 : vector<2x32xf32>
    %101 = vector.extract_strided_slice %61 {offsets = [14, 0], sizes = [2, 32], strides = [1, 1]} : vector<16x32xf32> to vector<2x32xf32>
    %102 = arith.truncf %100 : vector<2x32xf32> to vector<2x32xbf16>
    %cst_41 = arith.constant dense<0.000000e+00> : vector<2x32xf32>
    %103 = tpu.matmul %102, %63, %cst_41 {dimension_numbers = #tpu.dot_dimension_numbers<[1], [0], [0], [1], [0, 0, 1, 1], [], []>} : vector<2x32xbf16>, vector<32x32xbf16>, vector<2x32xf32> -> vector<2x32xf32>
    %104 = arith.addf %101, %103 : vector<2x32xf32>
    %105 = math.tanh %104 : vector<2x32xf32>
    %106 = vector.extract_strided_slice %70 {offsets = [0, 0], sizes = [1, 32], strides = [1, 1]} : vector<2x32xf32> to vector<1x32xf32>
    %107 = vector.extract_strided_slice %75 {offsets = [0, 0], sizes = [1, 32], strides = [1, 1]} : vector<2x32xf32> to vector<1x32xf32>
    %108 = vector.extract_strided_slice %80 {offsets = [0, 0], sizes = [1, 32], strides = [1, 1]} : vector<2x32xf32> to vector<1x32xf32>
    %109 = vector.extract_strided_slice %85 {offsets = [0, 0], sizes = [1, 32], strides = [1, 1]} : vector<2x32xf32> to vector<1x32xf32>
    %110 = vector.extract_strided_slice %90 {offsets = [0, 0], sizes = [1, 32], strides = [1, 1]} : vector<2x32xf32> to vector<1x32xf32>
    %111 = vector.extract_strided_slice %95 {offsets = [0, 0], sizes = [1, 32], strides = [1, 1]} : vector<2x32xf32> to vector<1x32xf32>
    %112 = vector.extract_strided_slice %100 {offsets = [0, 0], sizes = [1, 32], strides = [1, 1]} : vector<2x32xf32> to vector<1x32xf32>
    %113 = vector.extract_strided_slice %105 {offsets = [0, 0], sizes = [1, 32], strides = [1, 1]} : vector<2x32xf32> to vector<1x32xf32>
    %114 = tpu.concatenate %106, %107, %108, %109, %110, %111, %112, %113 in 0 : vector<1x32xf32>, vector<1x32xf32>, vector<1x32xf32>, vector<1x32xf32>, vector<1x32xf32>, vector<1x32xf32>, vector<1x32xf32>, vector<1x32xf32> -> vector<8x32xf32>
    %c0_42 = arith.constant 0 : index
    %c0_43 = arith.constant 0 : index
    %c0_44 = arith.constant 0 : index
    %115 = vector.load %arg6[%c0_42, %c0_43, %c0_44] : memref<2x8x32xf32, #tpu.memory_space<vmem>>, vector<1x8x32xf32>
    %116 = vector.shape_cast %115 : vector<1x8x32xf32> to vector<8x32xf32>
    %117 = vector.shape_cast %114 : vector<8x32xf32> to vector<1x8x32xf32>
    tpu.vector_store %arg6[%c0_42, %c0_43, %c0_44], %117 {strides = array<i32>} : memref<2x8x32xf32, #tpu.memory_space<vmem>>, vector<1x8x32xf32>,
    %118 = vector.extract_strided_slice %70 {offsets = [1, 0], sizes = [1, 32], strides = [1, 1]} : vector<2x32xf32> to vector<1x32xf32>
    %119 = vector.extract_strided_slice %75 {offsets = [1, 0], sizes = [1, 32], strides = [1, 1]} : vector<2x32xf32> to vector<1x32xf32>
    %120 = vector.extract_strided_slice %80 {offsets = [1, 0], sizes = [1, 32], strides = [1, 1]} : vector<2x32xf32> to vector<1x32xf32>
    %121 = vector.extract_strided_slice %85 {offsets = [1, 0], sizes = [1, 32], strides = [1, 1]} : vector<2x32xf32> to vector<1x32xf32>
    %122 = vector.extract_strided_slice %90 {offsets = [1, 0], sizes = [1, 32], strides = [1, 1]} : vector<2x32xf32> to vector<1x32xf32>
    %123 = vector.extract_strided_slice %95 {offsets = [1, 0], sizes = [1, 32], strides = [1, 1]} : vector<2x32xf32> to vector<1x32xf32>
    %124 = vector.extract_strided_slice %100 {offsets = [1, 0], sizes = [1, 32], strides = [1, 1]} : vector<2x32xf32> to vector<1x32xf32>
    %125 = vector.extract_strided_slice %105 {offsets = [1, 0], sizes = [1, 32], strides = [1, 1]} : vector<2x32xf32> to vector<1x32xf32>
    %126 = tpu.concatenate %118, %119, %120, %121, %122, %123, %124, %125 in 0 : vector<1x32xf32>, vector<1x32xf32>, vector<1x32xf32>, vector<1x32xf32>, vector<1x32xf32>, vector<1x32xf32>, vector<1x32xf32>, vector<1x32xf32> -> vector<8x32xf32>
    %c1_45 = arith.constant 1 : index
    %c0_46 = arith.constant 0 : index
    %c0_47 = arith.constant 0 : index
    %127 = vector.load %arg6[%c1_45, %c0_46, %c0_47] : memref<2x8x32xf32, #tpu.memory_space<vmem>>, vector<1x8x32xf32>
    %128 = vector.shape_cast %127 : vector<1x8x32xf32> to vector<8x32xf32>
    %129 = vector.shape_cast %126 : vector<8x32xf32> to vector<1x8x32xf32>
    tpu.vector_store %arg6[%c1_45, %c0_46, %c0_47], %129 {strides = array<i32>} : memref<2x8x32xf32, #tpu.memory_space<vmem>>, vector<1x8x32xf32>,
    %c1_48 = arith.constant 1 : index
    %c0_49 = arith.constant 0 : index
    %c0_50 = arith.constant 0 : index
    %130 = vector.load %arg8[%c1_48, %c0_49, %c0_50] : memref<2x2x32xf32, #tpu.memory_space<vmem>>, vector<1x2x32xf32>
    %131 = vector.shape_cast %130 : vector<1x2x32xf32> to vector<2x32xf32>
    %132 = vector.shape_cast %105 : vector<2x32xf32> to vector<1x2x32xf32>
    tpu.vector_store %arg8[%c1_48, %c0_49, %c0_50], %132 {strides = array<i32>} : memref<2x2x32xf32, #tpu.memory_space<vmem>>, vector<1x2x32xf32>,
    %c0_51 = arith.constant 0 : index
    %c0_52 = arith.constant 0 : index
    %c0_53 = arith.constant 0 : index
    %133 = vector.load %arg8[%c0_51, %c0_52, %c0_53] : memref<2x2x32xf32, #tpu.memory_space<vmem>>, vector<2x2x32xf32>
    %c0_54 = arith.constant 0 : index
    %c0_55 = arith.constant 0 : index
    %c0_56 = arith.constant 0 : index
    %134 = vector.load %arg7[%c0_54, %c0_55, %c0_56] : memref<2x2x32xf32, #tpu.memory_space<vmem>>, vector<2x2x32xf32>
    tpu.vector_store %arg7[%c0_54, %c0_55, %c0_56], %133 {strides = array<i32>} : memref<2x2x32xf32, #tpu.memory_space<vmem>>, vector<2x2x32xf32>,
    return
  }
  func.func @transform_0(%arg0: i32) -> (i32, i32) {
    %c0_i32 = arith.constant 0 : i32
    %c0_i32_0 = arith.constant 0 : i32
    return %arg0, %c0_i32 : i32, i32
  }
  func.func @transform_1(%arg0: i32) -> (i32, i32, i32) {
    %c0_i32 = arith.constant 0 : i32
    %c0_i32_0 = arith.constant 0 : i32
    %c0_i32_1 = arith.constant 0 : i32
    %c0_i32_2 = arith.constant 0 : i32
    return %c0_i32, %c0_i32_0, %c0_i32_1 : i32, i32, i32
  }
  func.func @transform_2(%arg0: i32) -> (i32, i32, i32) {
    %c0_i32 = arith.constant 0 : i32
    %c0_i32_0 = arith.constant 0 : i32
    %c0_i32_1 = arith.constant 0 : i32
    %c0_i32_2 = arith.constant 0 : i32
    return %c0_i32, %c0_i32_0, %c0_i32_1 : i32, i32, i32
  }
  func.func @transform_3(%arg0: i32) -> (i32, i32, i32) {
    %c0_i32 = arith.constant 0 : i32
    %c0_i32_0 = arith.constant 0 : i32
    %c0_i32_1 = arith.constant 0 : i32
    %c0_i32_2 = arith.constant 0 : i32
    return %c0_i32, %c0_i32_0, %c0_i32_1 : i32, i32, i32
  }
  func.func @transform_4(%arg0: i32) -> (i32, i32, i32) {
    %c0_i32 = arith.constant 0 : i32
    %c0_i32_0 = arith.constant 0 : i32
    %c0_i32_1 = arith.constant 0 : i32
    %c0_i32_2 = arith.constant 0 : i32
    return %c0_i32, %c0_i32_0, %c0_i32_1 : i32, i32, i32
  }
  func.func @transform_5(%arg0: i32) -> (i32, i32, i32) {
    %c0_i32 = arith.constant 0 : i32
    %c0_i32_0 = arith.constant 0 : i32
    %c0_i32_1 = arith.constant 0 : i32
    return %c0_i32, %arg0, %c0_i32_0 : i32, i32, i32
  }
  func.func @transform_6(%arg0: i32) -> (i32, i32, i32) {
    %c0_i32 = arith.constant 0 : i32
    %c0_i32_0 = arith.constant 0 : i32
    %c0_i32_1 = arith.constant 0 : i32
    %c0_i32_2 = arith.constant 0 : i32
    return %c0_i32, %c0_i32_0, %c0_i32_1 : i32, i32, i32
  }
}

</mosaic_0001>

<llo_original>
// kernel: tpu_custom_call.1
$region0: #{tpu_custom_call.1}
  #allocation0 [shape = 'u32[]', space=smem, size = 0x4, offset = 0x4, fixed_abs, tag = 'smem constant byte address 0x4 - core index']
  #allocation1 [shape = 'u32[72,128]{1,0:T(1,128)}', space=vmem, size = 0x9000, scoped, tag = 'internal scratch']
  #allocation2 [shape = 'f32[2,2,32]{2,1,0:T(2,128)}', space=vmem, size = 0x800, scoped, tag = 'scratch operand']
  #allocation3 [shape = 'bf16[16,32]{1,0:T(8,128)(2,1)}', space=vmem, size = 0x1000, scoped, tag = 'scratch operand']
  %s0 = inlined_call_operand.hbm [shape: f32[16,32], index: 0, kind: input, shape index: {}]
  %s1 = inlined_call_operand.hbm [shape: bf16[1,32,32], index: 1, kind: input, shape index: {}]
  %s2 = inlined_call_operand.hbm [shape: bf16[2,32,32], index: 2, kind: input, shape index: {}]
  %s3 = inlined_call_operand.vmem [shape: f32[1,1,32], index: 3, kind: input, shape index: {}]
  %s4 = inlined_call_operand.hbm [shape: f32[2,2,32], index: 4, kind: input, shape index: {}]
  %s5 = inlined_call_operand.hbm [shape: f32[2,8,32], index: 5, kind: output, shape index: {0}]
  %s6 = inlined_call_operand.hbm [shape: f32[2,2,32], index: 6, kind: output, shape index: {1}]
  %7 = xla_tuple %s5, %s6
  %s8 = sld [smem:[#allocation0]]
  $region58: #{tpu_custom_call.1} parent=0
    _
  %s10 = ssub.s32 1, %s8
  %s11 = scalar_select 0, %s10, %s8
  $region1: #{tpu_custom_call.1} parent=0
    #allocation4 [shape = 'u8[8192]{0}', space=vmem, size = 0x2000, scoped, tag = 'input window, operand 0, single buffered']
    #allocation5 [shape = 's32[1]{0}', space=sflag, size = 0x4, scoped, tag = 'scoped memory for tpu_custom_call.1']
    #allocation6 [shape = 's32[1]{0}', space=sflag, size = 0x4, scoped, tag = 'scoped memory for tpu_custom_call.1']
    #allocation7 [shape = 'u8[8192]{0}', space=vmem, size = 0x2000, scoped, tag = 'input window, operand 1, single buffered']
    #allocation8 [shape = 's32[1]{0}', space=sflag, size = 0x4, scoped, tag = 'scoped memory for tpu_custom_call.1']
    #allocation9 [shape = 'u8[16384]{0}', space=vmem, size = 0x4000, scoped, tag = 'input window, operand 2, single buffered']
    #allocation10 [shape = 'u8[2048]{0}', space=vmem, size = 0x800, scoped, tag = 'input window, operand 4, single buffered']
    #allocation11 [shape = 's32[1]{0}', space=sflag, size = 0x4, scoped, tag = 'scoped memory for tpu_custom_call.1']
    #allocation12 [shape = 'u8[8192]{0}', space=vmem, size = 0x2000, scoped, tag = 'output window, operand 0, single buffered']
    #allocation13 [shape = 'u8[2048]{0}', space=vmem, size = 0x800, scoped, tag = 'output window, operand 1, single buffered']
    #allocation14 [shape = 's32[1]{0}', space=sflag, size = 0x4, scoped, tag = 'scoped memory for tpu_custom_call.1']
    %12 = vsyncpa [#allocation5], 0
    %13 = vsyncpa [#allocation8], 0
    %14 = vsyncpa [#allocation11], 0
    %15 = vsyncpa [#allocation6], 0
    %16 = vsyncpa [#allocation14], 0
    // Predicated region
    $region2: #{tpu_custom_call.1} parent=1 // pred_check
      _
    $region3: #{tpu_custom_call.1} parent=1 // pred_check_branch
      %18 = sbr.rel (0) target = $region5
    $region4: #{tpu_custom_call.1} parent=1 // pred_region
      %20 = vsyncadd [#allocation5], 0
      %s21 = sshll.u32 %s0, 4
      %s22 = int_to_ptr.hbm [resolvable:$true] %s21
      %s23 = sshll.u32 [#allocation4], 4
      %s24 = int_to_ptr.vmem [resolvable:$true] %s23
      %29 = dma.hbm_to_vmem [thread:$0]  %s22, 256, %s24, [#allocation5], 128, 128, 8
    $region5: #{tpu_custom_call.1} parent=1 // pred_fallthru
      _
    // Predicated region
    $region6: #{tpu_custom_call.1} parent=1 // pred_check
      _
    $region7: #{tpu_custom_call.1} parent=1 // pred_check_branch
      %31 = sbr.rel (0) target = $region9
    $region8: #{tpu_custom_call.1} parent=1 // pred_region
      %33 = vsyncadd [#allocation8], 0
      %s34 = sshll.u32 %s1, 4
      %s35 = int_to_ptr.hbm [resolvable:$true] %s34
      %s36 = sshll.u32 [#allocation7], 4
      %s37 = int_to_ptr.vmem [resolvable:$true] %s36
      %42 = dma.hbm_to_vmem [thread:$0]  %s35, 256, %s37, [#allocation8], 64, 64, 4
    $region9: #{tpu_custom_call.1} parent=1 // pred_fallthru
      _
    // Predicated region
    $region10: #{tpu_custom_call.1} parent=1 // pred_check
      _
    $region11: #{tpu_custom_call.1} parent=1 // pred_check_branch
      %44 = sbr.rel (0) target = $region13
    $region12: #{tpu_custom_call.1} parent=1 // pred_region
      %46 = vsyncadd [#allocation8], 0
      %s47 = sshll.u32 %s2, 4
      %s48 = int_to_ptr.hbm [resolvable:$true] %s47
      %s49 = sshll.u32 [#allocation9], 4
      %s50 = int_to_ptr.vmem [resolvable:$true] %s49
      %55 = dma.hbm_to_vmem [thread:$0]  %s48, 512, %s50, [#allocation8], 64, 64, 4
    $region13: #{tpu_custom_call.1} parent=1 // pred_fallthru
      _
    // Predicated region
    $region14: #{tpu_custom_call.1} parent=1 // pred_check
      _
    $region15: #{tpu_custom_call.1} parent=1 // pred_check_branch
      %57 = sbr.rel (0) target = $region17
    $region16: #{tpu_custom_call.1} parent=1 // pred_region
      _
    $region17: #{tpu_custom_call.1} parent=1 // pred_fallthru
      _
    // Predicated region
    $region18: #{tpu_custom_call.1} parent=1 // pred_check
      _
    $region19: #{tpu_custom_call.1} parent=1 // pred_check_branch
      %59 = sbr.rel (0) target = $region21
    $region20: #{tpu_custom_call.1} parent=1 // pred_region
      %61 = vsyncadd [#allocation11], 0
      %s62 = sshll.u32 %s4, 4
      %s63 = int_to_ptr.hbm [resolvable:$true] %s62
      %s64 = sshll.u32 [#allocation10], 4
      %s65 = int_to_ptr.vmem [resolvable:$true] %s64
      %70 = dma.hbm_to_vmem [thread:$0]  %s63, 64, %s65, [#allocation11], 32, 32, 2
    $region21: #{tpu_custom_call.1} parent=1 // pred_fallthru
      _
    // Predicated region
    $region22: #{tpu_custom_call.1} parent=1 // pred_check
      _
    $region23: #{tpu_custom_call.1} parent=1 // pred_check_branch
      %72 = sbr.rel (0) target = $region25
    $region24: #{tpu_custom_call.1} parent=1 // pred_region
      %74 = dma.done [#allocation5], 256
    $region25: #{tpu_custom_call.1} parent=1 // pred_fallthru
      _
    // Predicated region
    $region26: #{tpu_custom_call.1} parent=1 // pred_check
      _
    $region27: #{tpu_custom_call.1} parent=1 // pred_check_branch
      %76 = sbr.rel (0) target = $region29
    $region28: #{tpu_custom_call.1} parent=1 // pred_region
      %78 = dma.done [#allocation8], 256
    $region29: #{tpu_custom_call.1} parent=1 // pred_fallthru
      _
    // Predicated region
    $region30: #{tpu_custom_call.1} parent=1 // pred_check
      _
    $region31: #{tpu_custom_call.1} parent=1 // pred_check_branch
      %80 = sbr.rel (0) target = $region33
    $region32: #{tpu_custom_call.1} parent=1 // pred_region
      %82 = dma.done [#allocation8], 512
    $region33: #{tpu_custom_call.1} parent=1 // pred_fallthru
      _
    // Predicated region
    $region34: #{tpu_custom_call.1} parent=1 // pred_check
      _
    $region35: #{tpu_custom_call.1} parent=1 // pred_check_branch
      %84 = sbr.rel (0) target = $region37
    $region36: #{tpu_custom_call.1} parent=1 // pred_region
      %86 = dma.done [#allocation11], 64
    $region37: #{tpu_custom_call.1} parent=1 // pred_fallthru
      _
    %p88 = scmp.eq.s32.totalorder 0, 0
    // Predicated region
    $region38: #{tpu_custom_call.1} parent=1 // pred_check
      %p89 = pneg %p88
    $region39: #{tpu_custom_call.1} parent=1 // pred_check_branch
      %91 = sbr.rel (%p89) target = $region41
    $region40: #{tpu_custom_call.1} parent=1 // pred_region
      %v92 = vld [vmem:[#allocation10] sm:$0x3]
      %v93 = vld [vmem:[#allocation10 + $0x2] sm:$0x3]
      %vm94 = vcmask 254976
      %95 = vst.msk [vmem:[#allocation2] sm:$0x3] %vm94, %v92
      %96 = vst.msk [vmem:[#allocation2 + $0x2] sm:$0x3] %vm94, %v93
    $region41: #{tpu_custom_call.1} parent=1 // pred_fallthru
      _
    %v97 = vld [vmem:[#allocation9] sm:$0xf]
    %v98 = vld [vmem:[#allocation9 + $0x4] sm:$0xf]
    %v99 = vld [vmem:[#allocation9 + $0x8] sm:$0xf]
    %v100 = vld [vmem:[#allocation9 + $0xc] sm:$0xf]
    %v101 = vld [vmem:[#allocation2] sm:$0x3]
    %v102 = vld [vmem:[#allocation4] sm:$0xff]
    %v103 = vld [vmem:[#allocation4 + $0x8] sm:$0xff]
    %v104 = vpack.c.bf16 %v101, %v101
    %v109 = vunpack.c.l.b16 %v97
    %v110 = vunpack.c.l.b16 %v98
    %v111 = vunpack.c.l.b16 %v99
    %v112 = vunpack.c.l.b16 %v100
    %v113 = vpack.c.b16 %v110, %v109
    %v114 = vpack.c.b16 %v112, %v111
    %vm117 = vcmask 261120
    %v119 = vsel %vm117, %v104, 0
    %121 = vmatpush.bf16.msra.mxu0 0
    %122 = vmatpush.bf16.msra.mxu0 0
    %123 = vmatpush.bf16.msra.mxu0 0
    %124 = vmatpush.bf16.msra.mxu0 0
    %125 = vmatpush.bf16.msra.mxu0 0
    %126 = vmatpush.bf16.msra.mxu0 0
    %127 = vmatpush.bf16.msra.mxu0 %v114
    %128 = vmatpush.bf16.msra.mxu0 %v113
    %129 = vmatmul.bf16.gmra.mxu0 %v119
    %v130 = vpop.f32.mrf.mxu0
    %v131 = vadd.f32 0.0, %v130
    %v132 = vpop.f32.mrf.mxu0
    %133 = vdwg.mxu0
    %v134 = vadd.f32 %v102, %v131
    %v135 = vtanh.pop %v134
    %v136 = vpack.c.bf16 %v135, %v135
    %v138 = vsel %vm117, %v136, 0
    %140 = vmatpush.bf16.msra.mxu0 0
    %141 = vmatpush.bf16.msra.mxu0 0
    %142 = vmatpush.bf16.msra.mxu0 0
    %143 = vmatpush.bf16.msra.mxu0 0
    %144 = vmatpush.bf16.msra.mxu0 0
    %145 = vmatpush.bf16.msra.mxu0 0
    %146 = vmatpush.bf16.msra.mxu0 %v114
    %147 = vmatpush.bf16.msra.mxu0 %v113
    %148 = vmatmul.bf16.gmra.mxu0 %v138
    %v149 = vpop.f32.mrf.mxu0
    %v150 = vadd.f32 0.0, %v149
    %v151 = vpop.f32.mrf.mxu0
    %152 = vdwg.mxu0
    %v154 = vrot.slane %v150, 6
    %v156 = vadd.f32 %v102, %v154
    %v157 = vtanh.pop %v156
    %v158 = vpack.c.bf16 %v157, %v157
    %v160 = vrot.slane %v158, 1
    %v162 = vsel %vm117, %v160, 0
    %164 = vmatpush.bf16.msra.mxu0 0
    %165 = vmatpush.bf16.msra.mxu0 0
    %166 = vmatpush.bf16.msra.mxu0 0
    %167 = vmatpush.bf16.msra.mxu0 0
    %168 = vmatpush.bf16.msra.mxu0 0
    %169 = vmatpush.bf16.msra.mxu0 0
    %170 = vmatpush.bf16.msra.mxu0 %v114
    %171 = vmatpush.bf16.msra.mxu0 %v113
    %172 = vmatmul.bf16.gmra.mxu0 %v162
    %v173 = vpop.f32.mrf.mxu0
    %v174 = vadd.f32 0.0, %v173
    %v175 = vpop.f32.mrf.mxu0
    %176 = vdwg.mxu0
    %v178 = vrot.slane %v174, 4
    %v180 = vadd.f32 %v102, %v178
    %v181 = vtanh.pop %v180
    %v182 = vpack.c.bf16 %v181, %v181
    %v184 = vrot.slane %v182, 2
    %v186 = vsel %vm117, %v184, 0
    %188 = vmatpush.bf16.msra.mxu0 0
    %189 = vmatpush.bf16.msra.mxu0 0
    %190 = vmatpush.bf16.msra.mxu0 0
    %191 = vmatpush.bf16.msra.mxu0 0
    %192 = vmatpush.bf16.msra.mxu0 0
    %193 = vmatpush.bf16.msra.mxu0 0
    %194 = vmatpush.bf16.msra.mxu0 %v114
    %195 = vmatpush.bf16.msra.mxu0 %v113
    %196 = vmatmul.bf16.gmra.mxu0 %v186
    %v197 = vpop.f32.mrf.mxu0
    %v198 = vadd.f32 0.0, %v197
    %v199 = vpop.f32.mrf.mxu0
    %200 = vdwg.mxu0
    %v202 = vrot.slane %v198, 2
    %v204 = vadd.f32 %v102, %v202
    %v205 = vtanh.pop %v204
    %v206 = vpack.c.bf16 %v205, %v205
    %v208 = vrot.slane %v206, 3
    %v210 = vsel %vm117, %v208, 0
    %212 = vmatpush.bf16.msra.mxu0 0
    %213 = vmatpush.bf16.msra.mxu0 0
    %214 = vmatpush.bf16.msra.mxu0 0
    %215 = vmatpush.bf16.msra.mxu0 0
    %216 = vmatpush.bf16.msra.mxu0 0
    %217 = vmatpush.bf16.msra.mxu0 0
    %218 = vmatpush.bf16.msra.mxu0 %v114
    %219 = vmatpush.bf16.msra.mxu0 %v113
    %220 = vmatmul.bf16.gmra.mxu0 %v210
    %v221 = vpop.f32.mrf.mxu0
    %v222 = vadd.f32 0.0, %v221
    %v223 = vpop.f32.mrf.mxu0
    %224 = vdwg.mxu0
    %v225 = vadd.f32 %v103, %v222
    %v226 = vtanh.pop %v225
    %v227 = vpack.c.bf16 %v226, %v226
    %v229 = vsel %vm117, %v227, 0
    %231 = vmatpush.bf16.msra.mxu0 0
    %232 = vmatpush.bf16.msra.mxu0 0
    %233 = vmatpush.bf16.msra.mxu0 0
    %234 = vmatpush.bf16.msra.mxu0 0
    %235 = vmatpush.bf16.msra.mxu0 0
    %236 = vmatpush.bf16.msra.mxu0 0
    %237 = vmatpush.bf16.msra.mxu0 %v114
    %238 = vmatpush.bf16.msra.mxu0 %v113
    %239 = vmatmul.bf16.gmra.mxu0 %v229
    %v240 = vpop.f32.mrf.mxu0
    %v241 = vadd.f32 0.0, %v240
    %v242 = vpop.f32.mrf.mxu0
    %243 = vdwg.mxu0
    %v245 = vrot.slane %v241, 6
    %v247 = vadd.f32 %v103, %v245
    %v248 = vtanh.pop %v247
    %v249 = vpack.c.bf16 %v248, %v248
    %v251 = vrot.slane %v249, 1
    %v253 = vsel %vm117, %v251, 0
    %255 = vmatpush.bf16.msra.mxu0 0
    %256 = vmatpush.bf16.msra.mxu0 0
    %257 = vmatpush.bf16.msra.mxu0 0
    %258 = vmatpush.bf16.msra.mxu0 0
    %259 = vmatpush.bf16.msra.mxu0 0
    %260 = vmatpush.bf16.msra.mxu0 0
    %261 = vmatpush.bf16.msra.mxu0 %v114
    %262 = vmatpush.bf16.msra.mxu0 %v113
    %263 = vmatmul.bf16.gmra.mxu0 %v253
    %v264 = vpop.f32.mrf.mxu0
    %v265 = vadd.f32 0.0, %v264
    %v266 = vpop.f32.mrf.mxu0
    %267 = vdwg.mxu0
    %v269 = vrot.slane %v265, 4
    %v271 = vadd.f32 %v103, %v269
    %v272 = vtanh.pop %v271
    %v273 = vpack.c.bf16 %v272, %v272
    %v275 = vrot.slane %v273, 2
    %v277 = vsel %vm117, %v275, 0
    %279 = vmatpush.bf16.msra.mxu0 0
    %280 = vmatpush.bf16.msra.mxu0 0
    %281 = vmatpush.bf16.msra.mxu0 0
    %282 = vmatpush.bf16.msra.mxu0 0
    %283 = vmatpush.bf16.msra.mxu0 0
    %284 = vmatpush.bf16.msra.mxu0 0
    %285 = vmatpush.bf16.msra.mxu0 %v114
    %286 = vmatpush.bf16.msra.mxu0 %v113
    %287 = vmatmul.bf16.gmra.mxu0 %v277
    %v288 = vpop.f32.mrf.mxu0
    %v289 = vadd.f32 0.0, %v288
    %v290 = vpop.f32.mrf.mxu0
    %291 = vdwg.mxu0
    %v293 = vrot.slane %v289, 2
    %v295 = vadd.f32 %v103, %v293
    %v296 = vtanh.pop %v295
    %vm297 = vcmask 1041408
    %v298 = vsel %vm297, %v135, %v157
    %vm299 = vcmask 1043456
    %v300 = vsel %vm299, %v298, %v181
    %vm301 = vcmask 1045504
    %v302 = vsel %vm301, %v300, %v205
    %v303 = vsel %vm297, %v226, %v248
    %v304 = vsel %vm299, %v303, %v272
    %v305 = vsel %vm301, %v304, %v296
    %v306 = vpack.c.bf16 %v302, %v302
    %v307 = vpack.c.bf16 %v305, %v305
    %vm308 = vcmask 257024
    %309 = vst.msk [vmem:[#allocation3] sm:$0xf] %vm308, %v306
    %310 = vst.msk [vmem:[#allocation3 + $0x4] sm:$0xf] %vm308, %v307
    %vm311 = vcmask 261126
    %312 = vst.msk [vmem:[#allocation2 - $0x6] sm:$0xc0] %vm311, %v296
    %v313 = vld [vmem:[#allocation3] sm:$0xf]
    %v314 = vld [vmem:[#allocation3 + $0x4] sm:$0xf]
    %v315 = vld [vmem:[#allocation7] sm:$0xf]
    %v316 = vld [vmem:[#allocation7 + $0x4] sm:$0xf]
    %v317 = vld [vmem:[#allocation7 + $0x8] sm:$0xf]
    %v318 = vld [vmem:[#allocation7 + $0xc] sm:$0xf]
    %v319 = vld [vmem:[%s3] sm:$0x1]
    %v321 = vperm.slane %v319, 0
    %v325 = vunpack.c.l.b16 %v313
    %v326 = vunpack.c.l.b16 %v314
    %v327 = vpack.c.b16 %v326, %v325
    %v332 = vunpack.c.l.b16 %v315
    %v333 = vunpack.c.l.b16 %v316
    %v334 = vunpack.c.l.b16 %v317
    %v335 = vunpack.c.l.b16 %v318
    %v336 = vpack.c.b16 %v333, %v332
    %v337 = vpack.c.b16 %v335, %v334
    %v341 = vsel %vm117, %v327, 0
    %343 = vmatpush.bf16.msra.mxu0 0
    %344 = vmatpush.bf16.msra.mxu0 0
    %345 = vmatpush.bf16.msra.mxu0 0
    %346 = vmatpush.bf16.msra.mxu0 0
    %347 = vmatpush.bf16.msra.mxu0 0
    %348 = vmatpush.bf16.msra.mxu0 0
    %349 = vmatpush.bf16.msra.mxu0 %v337
    %350 = vmatpush.bf16.msra.mxu0 %v336
    %351 = vmatmul.bf16.gmra.mxu0 %v341
    %v352 = vpop.f32.mrf.mxu0
    %v353 = vadd.f32 %v321, %v352
    %v354 = vpop.f32.mrf.mxu0
    %v355 = vadd.f32 %v321, %v354
    %356 = vdwg.mxu0
    %s357 = scalar_lea.vmem [#allocation9], 16
    %v358 = vld [vmem:[%s357] sm:$0xf]
    %v359 = vld [vmem:[%s357 + $0x4] sm:$0xf]
    %v360 = vld [vmem:[%s357 + $0x8] sm:$0xf]
    %v361 = vld [vmem:[%s357 + $0xc] sm:$0xf]
    %s362 = scalar_lea.vmem [#allocation2], 2
    %v363 = vld [vmem:[%s362] sm:$0x3]
    %v364 = vpack.c.bf16 %v363, %v363
    %v369 = vunpack.c.l.b16 %v358
    %v370 = vunpack.c.l.b16 %v359
    %v371 = vunpack.c.l.b16 %v360
    %v372 = vunpack.c.l.b16 %v361
    %v373 = vpack.c.b16 %v370, %v369
    %v374 = vpack.c.b16 %v372, %v371
    %v378 = vsel %vm117, %v364, 0
    %380 = vmatpush.bf16.msra.mxu0 0
    %381 = vmatpush.bf16.msra.mxu0 0
    %382 = vmatpush.bf16.msra.mxu0 0
    %383 = vmatpush.bf16.msra.mxu0 0
    %384 = vmatpush.bf16.msra.mxu0 0
    %385 = vmatpush.bf16.msra.mxu0 0
    %386 = vmatpush.bf16.msra.mxu0 %v374
    %387 = vmatpush.bf16.msra.mxu0 %v373
    %388 = vmatmul.bf16.gmra.mxu0 %v378
    %v389 = vpop.f32.mrf.mxu0
    %v390 = vadd.f32 0.0, %v389
    %v391 = vpop.f32.mrf.mxu0
    %392 = vdwg.mxu0
    %v393 = vadd.f32 %v353, %v390
    %v394 = vtanh.pop %v393
    %v395 = vpack.c.bf16 %v394, %v394
    %v397 = vsel %vm117, %v395, 0
    %399 = vmatpush.bf16.msra.mxu0 0
    %400 = vmatpush.bf16.msra.mxu0 0
    %401 = vmatpush.bf16.msra.mxu0 0
    %402 = vmatpush.bf16.msra.mxu0 0
    %403 = vmatpush.bf16.msra.mxu0 0
    %404 = vmatpush.bf16.msra.mxu0 0
    %405 = vmatpush.bf16.msra.mxu0 %v374
    %406 = vmatpush.bf16.msra.mxu0 %v373
    %407 = vmatmul.bf16.gmra.mxu0 %v397
    %v408 = vpop.f32.mrf.mxu0
    %v409 = vadd.f32 0.0, %v408
    %v410 = vpop.f32.mrf.mxu0
    %411 = vdwg.mxu0
    %v413 = vrot.slane %v409, 6
    %v415 = vadd.f32 %v353, %v413
    %v416 = vtanh.pop %v415
    %v417 = vpack.c.bf16 %v416, %v416
    %v419 = vrot.slane %v417, 1
    %v421 = vsel %vm117, %v419, 0
    %423 = vmatpush.bf16.msra.mxu0 0
    %424 = vmatpush.bf16.msra.mxu0 0
    %425 = vmatpush.bf16.msra.mxu0 0
    %426 = vmatpush.bf16.msra.mxu0 0
    %427 = vmatpush.bf16.msra.mxu0 0
    %428 = vmatpush.bf16.msra.mxu0 0
    %429 = vmatpush.bf16.msra.mxu0 %v374
    %430 = vmatpush.bf16.msra.mxu0 %v373
    %431 = vmatmul.bf16.gmra.mxu0 %v421
    %v432 = vpop.f32.mrf.mxu0
    %v433 = vadd.f32 0.0, %v432
    %v434 = vpop.f32.mrf.mxu0
    %435 = vdwg.mxu0
    %v437 = vrot.slane %v433, 4
    %v439 = vadd.f32 %v353, %v437
    %v440 = vtanh.pop %v439
    %v441 = vpack.c.bf16 %v440, %v440
    %v443 = vrot.slane %v441, 2
    %v445 = vsel %vm117, %v443, 0
    %447 = vmatpush.bf16.msra.mxu0 0
    %448 = vmatpush.bf16.msra.mxu0 0
    %449 = vmatpush.bf16.msra.mxu0 0
    %450 = vmatpush.bf16.msra.mxu0 0
    %451 = vmatpush.bf16.msra.mxu0 0
    %452 = vmatpush.bf16.msra.mxu0 0
    %453 = vmatpush.bf16.msra.mxu0 %v374
    %454 = vmatpush.bf16.msra.mxu0 %v373
    %455 = vmatmul.bf16.gmra.mxu0 %v445
    %v456 = vpop.f32.mrf.mxu0
    %v457 = vadd.f32 0.0, %v456
    %v458 = vpop.f32.mrf.mxu0
    %459 = vdwg.mxu0
    %v461 = vrot.slane %v457, 2
    %v463 = vadd.f32 %v353, %v461
    %v464 = vtanh.pop %v463
    %v465 = vpack.c.bf16 %v464, %v464
    %v467 = vrot.slane %v465, 3
    %v469 = vsel %vm117, %v467, 0
    %471 = vmatpush.bf16.msra.mxu0 0
    %472 = vmatpush.bf16.msra.mxu0 0
    %473 = vmatpush.bf16.msra.mxu0 0
    %474 = vmatpush.bf16.msra.mxu0 0
    %475 = vmatpush.bf16.msra.mxu0 0
    %476 = vmatpush.bf16.msra.mxu0 0
    %477 = vmatpush.bf16.msra.mxu0 %v374
    %478 = vmatpush.bf16.msra.mxu0 %v373
    %479 = vmatmul.bf16.gmra.mxu0 %v469
    %v480 = vpop.f32.mrf.mxu0
    %v481 = vadd.f32 0.0, %v480
    %v482 = vpop.f32.mrf.mxu0
    %483 = vdwg.mxu0
    %v484 = vadd.f32 %v355, %v481
    %v485 = vtanh.pop %v484
    %v486 = vpack.c.bf16 %v485, %v485
    %v488 = vsel %vm117, %v486, 0
    %490 = vmatpush.bf16.msra.mxu0 0
    %491 = vmatpush.bf16.msra.mxu0 0
    %492 = vmatpush.bf16.msra.mxu0 0
    %493 = vmatpush.bf16.msra.mxu0 0
    %494 = vmatpush.bf16.msra.mxu0 0
    %495 = vmatpush.bf16.msra.mxu0 0
    %496 = vmatpush.bf16.msra.mxu0 %v374
    %497 = vmatpush.bf16.msra.mxu0 %v373
    %498 = vmatmul.bf16.gmra.mxu0 %v488
    %v499 = vpop.f32.mrf.mxu0
    %v500 = vadd.f32 0.0, %v499
    %v501 = vpop.f32.mrf.mxu0
    %502 = vdwg.mxu0
    %v504 = vrot.slane %v500, 6
    %v506 = vadd.f32 %v355, %v504
    %v507 = vtanh.pop %v506
    %v508 = vpack.c.bf16 %v507, %v507
    %v510 = vrot.slane %v508, 1
    %v512 = vsel %vm117, %v510, 0
    %514 = vmatpush.bf16.msra.mxu0 0
    %515 = vmatpush.bf16.msra.mxu0 0
    %516 = vmatpush.bf16.msra.mxu0 0
    %517 = vmatpush.bf16.msra.mxu0 0
    %518 = vmatpush.bf16.msra.mxu0 0
    %519 = vmatpush.bf16.msra.mxu0 0
    %520 = vmatpush.bf16.msra.mxu0 %v374
    %521 = vmatpush.bf16.msra.mxu0 %v373
    %522 = vmatmul.bf16.gmra.mxu0 %v512
    %v523 = vpop.f32.mrf.mxu0
    %v524 = vadd.f32 0.0, %v523
    %v525 = vpop.f32.mrf.mxu0
    %526 = vdwg.mxu0
    %v528 = vrot.slane %v524, 4
    %v530 = vadd.f32 %v355, %v528
    %v531 = vtanh.pop %v530
    %v532 = vpack.c.bf16 %v531, %v531
    %v534 = vrot.slane %v532, 2
    %v536 = vsel %vm117, %v534, 0
    %538 = vmatpush.bf16.msra.mxu0 0
    %539 = vmatpush.bf16.msra.mxu0 0
    %540 = vmatpush.bf16.msra.mxu0 0
    %541 = vmatpush.bf16.msra.mxu0 0
    %542 = vmatpush.bf16.msra.mxu0 0
    %543 = vmatpush.bf16.msra.mxu0 0
    %544 = vmatpush.bf16.msra.mxu0 %v374
    %545 = vmatpush.bf16.msra.mxu0 %v373
    %546 = vmatmul.bf16.gmra.mxu0 %v536
    %v547 = vpop.f32.mrf.mxu0
    %v548 = vadd.f32 0.0, %v547
    %v549 = vpop.f32.mrf.mxu0
    %550 = vdwg.mxu0
    %v552 = vrot.slane %v548, 2
    %v554 = vadd.f32 %v355, %v552
    %v555 = vtanh.pop %v554
    %v557 = vrot.slane %v416, 1
    %v560 = vrot.slane %v440, 2
    %v563 = vrot.slane %v464, 3
    %v566 = vrot.slane %v485, 4
    %v569 = vrot.slane %v507, 5
    %v572 = vrot.slane %v531, 6
    %v575 = vrot.slane %v555, 7
    %vm577 = vcmask 1040384
    %v578 = vsel %vm577, %v394, %v557
    %v579 = vsel %vm297, %v578, %v560
    %vm580 = vcmask 1042432
    %v581 = vsel %vm580, %v579, %v563
    %v582 = vsel %vm299, %v581, %v566
    %vm583 = vcmask 1044480
    %v584 = vsel %vm583, %v582, %v569
    %v585 = vsel %vm301, %v584, %v572
    %vm586 = vcmask 1046528
    %v587 = vsel %vm586, %v585, %v575
    %588 = vst.msk [vmem:[#allocation12] sm:$0xff] %vm117, %v587
    %v590 = vrot.slane %v394, 1
    %v592 = vrot.slane %v416, 2
    %v594 = vrot.slane %v440, 3
    %v596 = vrot.slane %v464, 4
    %v598 = vrot.slane %v485, 5
    %v600 = vrot.slane %v507, 6
    %v602 = vrot.slane %v531, 7
    %v604 = vsel %vm577, %v590, %v592
    %v605 = vsel %vm297, %v604, %v594
    %v606 = vsel %vm580, %v605, %v596
    %v607 = vsel %vm299, %v606, %v598
    %v608 = vsel %vm583, %v607, %v600
    %v609 = vsel %vm301, %v608, %v602
    %v610 = vsel %vm586, %v609, %v555
    %s611 = scalar_lea.vmem [#allocation12], 8
    %612 = vst.msk [vmem:[%s611] sm:$0xff] %vm117, %v610
    %613 = vst.msk [vmem:[%s362 - $0x6] sm:$0xc0] %vm311, %v555
    %v614 = vld [vmem:[#allocation2] sm:$0x3]
    %v615 = vld [vmem:[#allocation2 + $0x2] sm:$0x3]
    %vm616 = vcmask 254976
    %617 = vst.msk [vmem:[#allocation13] sm:$0x3] %vm616, %v614
    %618 = vst.msk [vmem:[#allocation13 + $0x2] sm:$0x3] %vm616, %v615
    // Predicated region
    $region42: #{tpu_custom_call.1} parent=1 // pred_check
      _
    $region43: #{tpu_custom_call.1} parent=1 // pred_check_branch
      %620 = sbr.rel (0) target = $region45
    $region44: #{tpu_custom_call.1} parent=1 // pred_region
      %622 = vsyncadd [#allocation6], 0
      %s623 = sshll.u32 [#allocation12], 4
      %s624 = int_to_ptr.vmem [resolvable:$true] %s623
      %s625 = sshll.u32 %s5, 4
      %s626 = int_to_ptr.hbm [resolvable:$true] %s625
      %631 = dma.vmem_to_hbm [thread:$0]  %s624, 256, %s626, [#allocation6], 128, 128, 8
    $region45: #{tpu_custom_call.1} parent=1 // pred_fallthru
      _
    // Predicated region
    $region46: #{tpu_custom_call.1} parent=1 // pred_check
      _
    $region47: #{tpu_custom_call.1} parent=1 // pred_check_branch
      %633 = sbr.rel (0) target = $region49
    $region48: #{tpu_custom_call.1} parent=1 // pred_region
      %635 = vsyncadd [#allocation14], 0
      %s636 = sshll.u32 [#allocation13], 4
      %s637 = int_to_ptr.vmem [resolvable:$true] %s636
      %s638 = sshll.u32 %s6, 4
      %s639 = int_to_ptr.hbm [resolvable:$true] %s638
      %644 = dma.vmem_to_hbm [thread:$0]  %s637, 64, %s639, [#allocation14], 32, 32, 2
    $region49: #{tpu_custom_call.1} parent=1 // pred_fallthru
      _
    // Predicated region
    $region50: #{tpu_custom_call.1} parent=1 // pred_check
      _
    $region51: #{tpu_custom_call.1} parent=1 // pred_check_branch
      %646 = sbr.rel (0) target = $region53
    $region52: #{tpu_custom_call.1} parent=1 // pred_region
      %648 = dma.done [#allocation6], 256
    $region53: #{tpu_custom_call.1} parent=1 // pred_fallthru
      _
    // Predicated region
    $region54: #{tpu_custom_call.1} parent=1 // pred_check
      _
    $region55: #{tpu_custom_call.1} parent=1 // pred_check_branch
      %650 = sbr.rel (0) target = $region57
    $region56: #{tpu_custom_call.1} parent=1 // pred_region
      %652 = dma.done [#allocation14], 64
    $region57: #{tpu_custom_call.1} parent=1 // pred_fallthru
      _
    %653 = vsyncpa [#allocation5], 1
    %654 = vsyncpa [#allocation8], 1
    %655 = vsyncpa [#allocation11], 1
    %656 = vsyncpa [#allocation6], 1
    %657 = vsyncpa [#allocation14], 1

</llo_original>
